<compile_context>
chip_gen: v5e
topology: v5e:2x2
jax: 0.10.0
libtpu: 0.0.40
codegen_flags: <defaults>
</compile_context>

<pallas_src>
import functools

import jax
import jax.numpy as jnp
import numpy as np
from jax import lax
from jax.experimental import pallas as pl
from jax.experimental.pallas import tpu as pltpu


def emotion_kernel(xproj_ref, whh_t_ref, wfc_t_ref, out_ref, *, batch):
    TB, H = xproj_ref.shape
    B = batch
    T = TB // B

    xproj = xproj_ref[...]          # (T*B, H) precomputed x_t @ W_ih^T + b_ih + b_hh
    whh_t = whh_t_ref[...]          # (H, H)   W_hh^T
    wfc_t = wfc_t_ref[...]          # (H, 2)   W_fc^T   (b_fc cancels under dim=1 softmax)

    h = jnp.zeros((B, H), jnp.float32)
    out_blocks = []
    # Static unroll over T: only tanh(x_t + h @ W_hh^T) is a true serial chain;
    # the per-step FC + log-softmax are independent and can overlap with it.
    for t in range(T):
        x_t = lax.slice_in_dim(xproj, t * B, (t + 1) * B, axis=0)      # (B, H), static
        h = jnp.tanh(
            x_t + jnp.dot(h, whh_t, preferred_element_type=jnp.float32))
        fc_t = jnp.dot(h, wfc_t, preferred_element_type=jnp.float32)    # (B, 2)
        # LogSoftmax(dim=1): normalize over the B batch rows of this timestep,
        # per class, with a per-group max shift for stability.
        m_t = jnp.max(fc_t, axis=0, keepdims=True)                       # (1, 2)
        s_t = jnp.sum(jnp.exp(fc_t - m_t), axis=0, keepdims=True)        # (1, 2)
        out_blocks.append(fc_t - m_t - jnp.log(s_t))                     # (B, 2)

    out_ref[...] = jnp.concatenate(out_blocks, axis=0)                   # (T*B, 2)


def emotion_forward(indices, emb, w_ih, b_ih, w_hh, b_hh, w_fc, b_fc):
    """indices: (T, B) int32.  Returns log-probs of shape (T, B, 2)."""
    del b_fc  # cancels exactly under LogSoftmax over the batch axis (dim=1)
    T, B = indices.shape
    H = w_hh.shape[0]

    # Hoisted glue (one-time, outside the latency-bound kernel):
    # embedding gather + input projection + folded RNN biases.
    embeds = jnp.take(emb, indices.astype(jnp.int32), axis=0)            # (T, B, E)
    xproj = (jnp.dot(embeds.reshape(T * B, -1), w_ih.T,
                     precision=lax.Precision.HIGHEST)
             + (b_ih + b_hh)).astype(jnp.float32)                        # (T*B, H)
    whh_t = w_hh.T.astype(jnp.float32)                                   # (H, H)
    wfc_t = w_fc.T.astype(jnp.float32)                                   # (H, 2)

    out = pl.pallas_call(
        functools.partial(emotion_kernel, batch=B),
        out_shape=jax.ShapeDtypeStruct((T * B, 2), jnp.float32),
        grid=(1,),
        in_specs=[
            pl.BlockSpec((T * B, H), lambda i: (0, 0)),   # precomputed input proj
            pl.BlockSpec((H, H), lambda i: (0, 0)),       # W_hh^T
            pl.BlockSpec((H, 2), lambda i: (0, 0)),       # W_fc^T
        ],
        out_specs=pl.BlockSpec((T * B, 2), lambda i: (0, 0)),
        compiler_params=pltpu.CompilerParams(dimension_semantics=("arbitrary",)),
    )(xproj, whh_t, wfc_t)

    return out.reshape(T, B, 2)


def reference_forward(indices, emb, w_ih, b_ih, w_hh, b_hh, w_fc, b_fc):
    """Pure-JAX reference mirroring the (fixed) PyTorch forward."""
    embeds = emb[indices]                               # (T, B, E)
    T, B, _ = embeds.shape
    H = w_hh.shape[0]
    h = jnp.zeros((B, H), jnp.float32)
    hs = []
    for t in range(T):
        h = jnp.tanh(embeds[t] @ w_ih.T + b_ih + h @ w_hh.T + b_hh)
        hs.append(h)
    rnn_out = jnp.stack(hs, axis=0)                     # (T, B, H)
    fc = rnn_out @ w_fc.T + b_fc                        # (T, B, 2)
    return jax.nn.log_softmax(fc, axis=1)


if __name__ == "__main__":
    # Small, deterministic configuration.
    T = 8          # max_len (sequence length)
    B = 8          # batch
    V = 40         # vocab_len (len(word_to_index) + 1)
    E = 50         # embedding_dim (fixed to 50 in the module)
    H = 32         # hidden_dim

    key = jax.random.PRNGKey(0)
    ks = jax.random.split(key, 8)
    bound = float(H) ** -0.5

    emb = jax.random.normal(ks[0], (V, E), jnp.float32)                     # "pretrained" table
    w_ih = jax.random.uniform(ks[1], (H, E), jnp.float32, -bound, bound)
    w_hh = jax.random.uniform(ks[2], (H, H), jnp.float32, -bound, bound)
    b_ih = jax.random.uniform(ks[3], (H,), jnp.float32, -bound, bound)
    b_hh = jax.random.uniform(ks[4], (H,), jnp.float32, -bound, bound)
    w_fc = jax.random.uniform(ks[5], (2, H), jnp.float32, -bound, bound)
    b_fc = jax.random.uniform(ks[6], (2,), jnp.float32, -bound, bound)

    indices = jax.random.randint(ks[7], (T, B), 0, V, jnp.int32)

    out = emotion_forward(indices, emb, w_ih, b_ih, w_hh, b_hh, w_fc, b_fc)
    out = jax.block_until_ready(out)

    with jax.default_matmul_precision("float32"):
        ref = jax.block_until_ready(
            reference_forward(indices, emb, w_ih, b_ih, w_hh, b_hh, w_fc, b_fc))

    assert out.shape == (T, B, 2), out.shape
    max_err = float(np.max(np.abs(np.asarray(out) - np.asarray(ref))))
    if max_err > 1e-3:
        raise AssertionError(f"mismatch vs reference: max abs err = {max_err}")

    print("KERNEL_OK")
</pallas_src>

<mosaic_0001>
module attributes {stable_mosaic.version = 11 : i64} {
  func.func @emotion_kernel(%arg0: i32, %arg1: memref<64x32xf32, #tpu.memory_space<vmem>>, %arg2: memref<32x32xf32, #tpu.memory_space<vmem>>, %arg3: memref<32x2xf32, #tpu.memory_space<vmem>>, %arg4: memref<64x2xf32, #tpu.memory_space<vmem>>) attributes {dimension_semantics = [#tpu.dimension_semantics<arbitrary>], iteration_bounds = array<i64: 1>, scalar_prefetch = 0 : i64, scratch_operands = 0 : i64, tpu.core_type = #tpu.core_type<tc>, window_params = [{pipeline_mode = #tpu.pipeline_mode<synchronous>, transform_indices = @transform_0, window_bounds = array<i64: 64, 32>}, {pipeline_mode = #tpu.pipeline_mode<synchronous>, transform_indices = @transform_1, window_bounds = array<i64: 32, 32>}, {pipeline_mode = #tpu.pipeline_mode<synchronous>, transform_indices = @transform_2, window_bounds = array<i64: 32, 2>}, {pipeline_mode = #tpu.pipeline_mode<synchronous>, transform_indices = @transform_3, window_bounds = array<i64: 64, 2>}]} {
    %c0 = arith.constant 0 : index
    %c0_0 = arith.constant 0 : index
    %0 = vector.load %arg1[%c0, %c0_0] : memref<64x32xf32, #tpu.memory_space<vmem>>, vector<64x32xf32>
    %c0_1 = arith.constant 0 : index
    %c0_2 = arith.constant 0 : index
    %1 = vector.load %arg2[%c0_1, %c0_2] : memref<32x32xf32, #tpu.memory_space<vmem>>, vector<32x32xf32>
    %c0_3 = arith.constant 0 : index
    %c0_4 = arith.constant 0 : index
    %2 = vector.load %arg3[%c0_3, %c0_4] : memref<32x2xf32, #tpu.memory_space<vmem>>, vector<32x2xf32>
    %cst = arith.constant 0.000000e+00 : f32
    %3 = vector.broadcast %cst : f32 to vector<8x32xf32>
    %4 = vector.extract_strided_slice %0 {offsets = [0, 0], sizes = [8, 32], strides = [1, 1]} : vector<64x32xf32> to vector<8x32xf32>
    %cst_5 = arith.constant dense<0.000000e+00> : vector<8x32xf32>
    %5 = tpu.matmul %3, %1, %cst_5 {dimension_numbers = #tpu.dot_dimension_numbers<[1], [0], [0], [1], [0, 0, 1, 1], [], []>} : vector<8x32xf32>, vector<32x32xf32>, vector<8x32xf32> -> vector<8x32xf32>
    %6 = arith.addf %4, %5 : vector<8x32xf32>
    %7 = math.tanh %6 : vector<8x32xf32>
    %cst_6 = arith.constant dense<0.000000e+00> : vector<8x2xf32>
    %8 = tpu.matmul %7, %2, %cst_6 {dimension_numbers = #tpu.dot_dimension_numbers<[1], [0], [0], [1], [0, 0, 1, 1], [], []>} : vector<8x32xf32>, vector<32x2xf32>, vector<8x2xf32> -> vector<8x2xf32>
    %cst_7 = arith.constant dense<0xFF800000> : vector<2xf32>
    %9 = vector.multi_reduction <maximumf>, %8, %cst_7 [0] : vector<8x2xf32> to vector<2xf32>
    %10 = vector.shape_cast %9 : vector<2xf32> to vector<1x2xf32>
    %11 = vector.broadcast %10 : vector<1x2xf32> to vector<8x2xf32>
    %12 = arith.subf %8, %11 : vector<8x2xf32>
    %13 = math.exp %12 : vector<8x2xf32>
    %cst_8 = arith.constant dense<0.000000e+00> : vector<2xf32>
    %14 = vector.multi_reduction <add>, %13, %cst_8 [0] : vector<8x2xf32> to vector<2xf32>
    %15 = vector.shape_cast %14 : vector<2xf32> to vector<1x2xf32>
    %16 = vector.broadcast %10 : vector<1x2xf32> to vector<8x2xf32>
    %17 = arith.subf %8, %16 : vector<8x2xf32>
    %18 = math.log %15 : vector<1x2xf32>
    %19 = vector.broadcast %18 : vector<1x2xf32> to vector<8x2xf32>
    %20 = arith.subf %17, %19 : vector<8x2xf32>
    %21 = vector.extract_strided_slice %0 {offsets = [8, 0], sizes = [8, 32], strides = [1, 1]} : vector<64x32xf32> to vector<8x32xf32>
    %cst_9 = arith.constant dense<0.000000e+00> : vector<8x32xf32>
    %22 = tpu.matmul %7, %1, %cst_9 {dimension_numbers = #tpu.dot_dimension_numbers<[1], [0], [0], [1], [0, 0, 1, 1], [], []>} : vector<8x32xf32>, vector<32x32xf32>, vector<8x32xf32> -> vector<8x32xf32>
    %23 = arith.addf %21, %22 : vector<8x32xf32>
    %24 = math.tanh %23 : vector<8x32xf32>
    %cst_10 = arith.constant dense<0.000000e+00> : vector<8x2xf32>
    %25 = tpu.matmul %24, %2, %cst_10 {dimension_numbers = #tpu.dot_dimension_numbers<[1], [0], [0], [1], [0, 0, 1, 1], [], []>} : vector<8x32xf32>, vector<32x2xf32>, vector<8x2xf32> -> vector<8x2xf32>
    %cst_11 = arith.constant dense<0xFF800000> : vector<2xf32>
    %26 = vector.multi_reduction <maximumf>, %25, %cst_11 [0] : vector<8x2xf32> to vector<2xf32>
    %27 = vector.shape_cast %26 : vector<2xf32> to vector<1x2xf32>
    %28 = vector.broadcast %27 : vector<1x2xf32> to vector<8x2xf32>
    %29 = arith.subf %25, %28 : vector<8x2xf32>
    %30 = math.exp %29 : vector<8x2xf32>
    %cst_12 = arith.constant dense<0.000000e+00> : vector<2xf32>
    %31 = vector.multi_reduction <add>, %30, %cst_12 [0] : vector<8x2xf32> to vector<2xf32>
    %32 = vector.shape_cast %31 : vector<2xf32> to vector<1x2xf32>
    %33 = vector.broadcast %27 : vector<1x2xf32> to vector<8x2xf32>
    %34 = arith.subf %25, %33 : vector<8x2xf32>
    %35 = math.log %32 : vector<1x2xf32>
    %36 = vector.broadcast %35 : vector<1x2xf32> to vector<8x2xf32>
    %37 = arith.subf %34, %36 : vector<8x2xf32>
    %38 = vector.extract_strided_slice %0 {offsets = [16, 0], sizes = [8, 32], strides = [1, 1]} : vector<64x32xf32> to vector<8x32xf32>
    %cst_13 = arith.constant dense<0.000000e+00> : vector<8x32xf32>
    %39 = tpu.matmul %24, %1, %cst_13 {dimension_numbers = #tpu.dot_dimension_numbers<[1], [0], [0], [1], [0, 0, 1, 1], [], []>} : vector<8x32xf32>, vector<32x32xf32>, vector<8x32xf32> -> vector<8x32xf32>
    %40 = arith.addf %38, %39 : vector<8x32xf32>
    %41 = math.tanh %40 : vector<8x32xf32>
    %cst_14 = arith.constant dense<0.000000e+00> : vector<8x2xf32>
    %42 = tpu.matmul %41, %2, %cst_14 {dimension_numbers = #tpu.dot_dimension_numbers<[1], [0], [0], [1], [0, 0, 1, 1], [], []>} : vector<8x32xf32>, vector<32x2xf32>, vector<8x2xf32> -> vector<8x2xf32>
    %cst_15 = arith.constant dense<0xFF800000> : vector<2xf32>
    %43 = vector.multi_reduction <maximumf>, %42, %cst_15 [0] : vector<8x2xf32> to vector<2xf32>
    %44 = vector.shape_cast %43 : vector<2xf32> to vector<1x2xf32>
    %45 = vector.broadcast %44 : vector<1x2xf32> to vector<8x2xf32>
    %46 = arith.subf %42, %45 : vector<8x2xf32>
    %47 = math.exp %46 : vector<8x2xf32>
    %cst_16 = arith.constant dense<0.000000e+00> : vector<2xf32>
    %48 = vector.multi_reduction <add>, %47, %cst_16 [0] : vector<8x2xf32> to vector<2xf32>
    %49 = vector.shape_cast %48 : vector<2xf32> to vector<1x2xf32>
    %50 = vector.broadcast %44 : vector<1x2xf32> to vector<8x2xf32>
    %51 = arith.subf %42, %50 : vector<8x2xf32>
    %52 = math.log %49 : vector<1x2xf32>
    %53 = vector.broadcast %52 : vector<1x2xf32> to vector<8x2xf32>
    %54 = arith.subf %51, %53 : vector<8x2xf32>
    %55 = vector.extract_strided_slice %0 {offsets = [24, 0], sizes = [8, 32], strides = [1, 1]} : vector<64x32xf32> to vector<8x32xf32>
    %cst_17 = arith.constant dense<0.000000e+00> : vector<8x32xf32>
    %56 = tpu.matmul %41, %1, %cst_17 {dimension_numbers = #tpu.dot_dimension_numbers<[1], [0], [0], [1], [0, 0, 1, 1], [], []>} : vector<8x32xf32>, vector<32x32xf32>, vector<8x32xf32> -> vector<8x32xf32>
    %57 = arith.addf %55, %56 : vector<8x32xf32>
    %58 = math.tanh %57 : vector<8x32xf32>
    %cst_18 = arith.constant dense<0.000000e+00> : vector<8x2xf32>
    %59 = tpu.matmul %58, %2, %cst_18 {dimension_numbers = #tpu.dot_dimension_numbers<[1], [0], [0], [1], [0, 0, 1, 1], [], []>} : vector<8x32xf32>, vector<32x2xf32>, vector<8x2xf32> -> vector<8x2xf32>
    %cst_19 = arith.constant dense<0xFF800000> : vector<2xf32>
    %60 = vector.multi_reduction <maximumf>, %59, %cst_19 [0] : vector<8x2xf32> to vector<2xf32>
    %61 = vector.shape_cast %60 : vector<2xf32> to vector<1x2xf32>
    %62 = vector.broadcast %61 : vector<1x2xf32> to vector<8x2xf32>
    %63 = arith.subf %59, %62 : vector<8x2xf32>
    %64 = math.exp %63 : vector<8x2xf32>
    %cst_20 = arith.constant dense<0.000000e+00> : vector<2xf32>
    %65 = vector.multi_reduction <add>, %64, %cst_20 [0] : vector<8x2xf32> to vector<2xf32>
    %66 = vector.shape_cast %65 : vector<2xf32> to vector<1x2xf32>
    %67 = vector.broadcast %61 : vector<1x2xf32> to vector<8x2xf32>
    %68 = arith.subf %59, %67 : vector<8x2xf32>
    %69 = math.log %66 : vector<1x2xf32>
    %70 = vector.broadcast %69 : vector<1x2xf32> to vector<8x2xf32>
    %71 = arith.subf %68, %70 : vector<8x2xf32>
    %72 = vector.extract_strided_slice %0 {offsets = [32, 0], sizes = [8, 32], strides = [1, 1]} : vector<64x32xf32> to vector<8x32xf32>
    %cst_21 = arith.constant dense<0.000000e+00> : vector<8x32xf32>
    %73 = tpu.matmul %58, %1, %cst_21 {dimension_numbers = #tpu.dot_dimension_numbers<[1], [0], [0], [1], [0, 0, 1, 1], [], []>} : vector<8x32xf32>, vector<32x32xf32>, vector<8x32xf32> -> vector<8x32xf32>
    %74 = arith.addf %72, %73 : vector<8x32xf32>
    %75 = math.tanh %74 : vector<8x32xf32>
    %cst_22 = arith.constant dense<0.000000e+00> : vector<8x2xf32>
    %76 = tpu.matmul %75, %2, %cst_22 {dimension_numbers = #tpu.dot_dimension_numbers<[1], [0], [0], [1], [0, 0, 1, 1], [], []>} : vector<8x32xf32>, vector<32x2xf32>, vector<8x2xf32> -> vector<8x2xf32>
    %cst_23 = arith.constant dense<0xFF800000> : vector<2xf32>
    %77 = vector.multi_reduction <maximumf>, %76, %cst_23 [0] : vector<8x2xf32> to vector<2xf32>
    %78 = vector.shape_cast %77 : vector<2xf32> to vector<1x2xf32>
    %79 = vector.broadcast %78 : vector<1x2xf32> to vector<8x2xf32>
    %80 = arith.subf %76, %79 : vector<8x2xf32>
    %81 = math.exp %80 : vector<8x2xf32>
    %cst_24 = arith.constant dense<0.000000e+00> : vector<2xf32>
    %82 = vector.multi_reduction <add>, %81, %cst_24 [0] : vector<8x2xf32> to vector<2xf32>
    %83 = vector.shape_cast %82 : vector<2xf32> to vector<1x2xf32>
    %84 = vector.broadcast %78 : vector<1x2xf32> to vector<8x2xf32>
    %85 = arith.subf %76, %84 : vector<8x2xf32>
    %86 = math.log %83 : vector<1x2xf32>
    %87 = vector.broadcast %86 : vector<1x2xf32> to vector<8x2xf32>
    %88 = arith.subf %85, %87 : vector<8x2xf32>
    %89 = vector.extract_strided_slice %0 {offsets = [40, 0], sizes = [8, 32], strides = [1, 1]} : vector<64x32xf32> to vector<8x32xf32>
    %cst_25 = arith.constant dense<0.000000e+00> : vector<8x32xf32>
    %90 = tpu.matmul %75, %1, %cst_25 {dimension_numbers = #tpu.dot_dimension_numbers<[1], [0], [0], [1], [0, 0, 1, 1], [], []>} : vector<8x32xf32>, vector<32x32xf32>, vector<8x32xf32> -> vector<8x32xf32>
    %91 = arith.addf %89, %90 : vector<8x32xf32>
    %92 = math.tanh %91 : vector<8x32xf32>
    %cst_26 = arith.constant dense<0.000000e+00> : vector<8x2xf32>
    %93 = tpu.matmul %92, %2, %cst_26 {dimension_numbers = #tpu.dot_dimension_numbers<[1], [0], [0], [1], [0, 0, 1, 1], [], []>} : vector<8x32xf32>, vector<32x2xf32>, vector<8x2xf32> -> vector<8x2xf32>
    %cst_27 = arith.constant dense<0xFF800000> : vector<2xf32>
    %94 = vector.multi_reduction <maximumf>, %93, %cst_27 [0] : vector<8x2xf32> to vector<2xf32>
    %95 = vector.shape_cast %94 : vector<2xf32> to vector<1x2xf32>
    %96 = vector.broadcast %95 : vector<1x2xf32> to vector<8x2xf32>
    %97 = arith.subf %93, %96 : vector<8x2xf32>
    %98 = math.exp %97 : vector<8x2xf32>
    %cst_28 = arith.constant dense<0.000000e+00> : vector<2xf32>
    %99 = vector.multi_reduction <add>, %98, %cst_28 [0] : vector<8x2xf32> to vector<2xf32>
    %100 = vector.shape_cast %99 : vector<2xf32> to vector<1x2xf32>
    %101 = vector.broadcast %95 : vector<1x2xf32> to vector<8x2xf32>
    %102 = arith.subf %93, %101 : vector<8x2xf32>
    %103 = math.log %100 : vector<1x2xf32>
    %104 = vector.broadcast %103 : vector<1x2xf32> to vector<8x2xf32>
    %105 = arith.subf %102, %104 : vector<8x2xf32>
    %106 = vector.extract_strided_slice %0 {offsets = [48, 0], sizes = [8, 32], strides = [1, 1]} : vector<64x32xf32> to vector<8x32xf32>
    %cst_29 = arith.constant dense<0.000000e+00> : vector<8x32xf32>
    %107 = tpu.matmul %92, %1, %cst_29 {dimension_numbers = #tpu.dot_dimension_numbers<[1], [0], [0], [1], [0, 0, 1, 1], [], []>} : vector<8x32xf32>, vector<32x32xf32>, vector<8x32xf32> -> vector<8x32xf32>
    %108 = arith.addf %106, %107 : vector<8x32xf32>
    %109 = math.tanh %108 : vector<8x32xf32>
    %cst_30 = arith.constant dense<0.000000e+00> : vector<8x2xf32>
    %110 = tpu.matmul %109, %2, %cst_30 {dimension_numbers = #tpu.dot_dimension_numbers<[1], [0], [0], [1], [0, 0, 1, 1], [], []>} : vector<8x32xf32>, vector<32x2xf32>, vector<8x2xf32> -> vector<8x2xf32>
    %cst_31 = arith.constant dense<0xFF800000> : vector<2xf32>
    %111 = vector.multi_reduction <maximumf>, %110, %cst_31 [0] : vector<8x2xf32> to vector<2xf32>
    %112 = vector.shape_cast %111 : vector<2xf32> to vector<1x2xf32>
    %113 = vector.broadcast %112 : vector<1x2xf32> to vector<8x2xf32>
    %114 = arith.subf %110, %113 : vector<8x2xf32>
    %115 = math.exp %114 : vector<8x2xf32>
    %cst_32 = arith.constant dense<0.000000e+00> : vector<2xf32>
    %116 = vector.multi_reduction <add>, %115, %cst_32 [0] : vector<8x2xf32> to vector<2xf32>
    %117 = vector.shape_cast %116 : vector<2xf32> to vector<1x2xf32>
    %118 = vector.broadcast %112 : vector<1x2xf32> to vector<8x2xf32>
    %119 = arith.subf %110, %118 : vector<8x2xf32>
    %120 = math.log %117 : vector<1x2xf32>
    %121 = vector.broadcast %120 : vector<1x2xf32> to vector<8x2xf32>
    %122 = arith.subf %119, %121 : vector<8x2xf32>
    %123 = vector.extract_strided_slice %0 {offsets = [56, 0], sizes = [8, 32], strides = [1, 1]} : vector<64x32xf32> to vector<8x32xf32>
    %cst_33 = arith.constant dense<0.000000e+00> : vector<8x32xf32>
    %124 = tpu.matmul %109, %1, %cst_33 {dimension_numbers = #tpu.dot_dimension_numbers<[1], [0], [0], [1], [0, 0, 1, 1], [], []>} : vector<8x32xf32>, vector<32x32xf32>, vector<8x32xf32> -> vector<8x32xf32>
    %125 = arith.addf %123, %124 : vector<8x32xf32>
    %126 = math.tanh %125 : vector<8x32xf32>
    %cst_34 = arith.constant dense<0.000000e+00> : vector<8x2xf32>
    %127 = tpu.matmul %126, %2, %cst_34 {dimension_numbers = #tpu.dot_dimension_numbers<[1], [0], [0], [1], [0, 0, 1, 1], [], []>} : vector<8x32xf32>, vector<32x2xf32>, vector<8x2xf32> -> vector<8x2xf32>
    %cst_35 = arith.constant dense<0xFF800000> : vector<2xf32>
    %128 = vector.multi_reduction <maximumf>, %127, %cst_35 [0] : vector<8x2xf32> to vector<2xf32>
    %129 = vector.shape_cast %128 : vector<2xf32> to vector<1x2xf32>
    %130 = vector.broadcast %129 : vector<1x2xf32> to vector<8x2xf32>
    %131 = arith.subf %127, %130 : vector<8x2xf32>
    %132 = math.exp %131 : vector<8x2xf32>
    %cst_36 = arith.constant dense<0.000000e+00> : vector<2xf32>
    %133 = vector.multi_reduction <add>, %132, %cst_36 [0] : vector<8x2xf32> to vector<2xf32>
    %134 = vector.shape_cast %133 : vector<2xf32> to vector<1x2xf32>
    %135 = vector.broadcast %129 : vector<1x2xf32> to vector<8x2xf32>
    %136 = arith.subf %127, %135 : vector<8x2xf32>
    %137 = math.log %134 : vector<1x2xf32>
    %138 = vector.broadcast %137 : vector<1x2xf32> to vector<8x2xf32>
    %139 = arith.subf %136, %138 : vector<8x2xf32>
    %140 = tpu.concatenate %20, %37, %54, %71, %88, %105, %122, %139 in 0 : vector<8x2xf32>, vector<8x2xf32>, vector<8x2xf32>, vector<8x2xf32>, vector<8x2xf32>, vector<8x2xf32>, vector<8x2xf32>, vector<8x2xf32> -> vector<64x2xf32>
    %c0_37 = arith.constant 0 : index
    %c0_38 = arith.constant 0 : index
    %141 = vector.load %arg4[%c0_37, %c0_38] : memref<64x2xf32, #tpu.memory_space<vmem>>, vector<64x2xf32>
    tpu.vector_store %arg4[%c0_37, %c0_38], %140 {strides = array<i32>} : memref<64x2xf32, #tpu.memory_space<vmem>>, vector<64x2xf32>,
    return
  }
  func.func @transform_0(%arg0: i32) -> (i32, i32) {
    %c0_i32 = arith.constant 0 : i32
    %c0_i32_0 = arith.constant 0 : i32
    %c0_i32_1 = arith.constant 0 : i32
    return %c0_i32, %c0_i32_0 : i32, i32
  }
  func.func @transform_1(%arg0: i32) -> (i32, i32) {
    %c0_i32 = arith.constant 0 : i32
    %c0_i32_0 = arith.constant 0 : i32
    %c0_i32_1 = arith.constant 0 : i32
    return %c0_i32, %c0_i32_0 : i32, i32
  }
  func.func @transform_2(%arg0: i32) -> (i32, i32) {
    %c0_i32 = arith.constant 0 : i32
    %c0_i32_0 = arith.constant 0 : i32
    %c0_i32_1 = arith.constant 0 : i32
    return %c0_i32, %c0_i32_0 : i32, i32
  }
  func.func @transform_3(%arg0: i32) -> (i32, i32) {
    %c0_i32 = arith.constant 0 : i32
    %c0_i32_0 = arith.constant 0 : i32
    %c0_i32_1 = arith.constant 0 : i32
    return %c0_i32, %c0_i32_0 : i32, i32
  }
}

</mosaic_0001>

<llo_original>
// kernel: tpu_custom_call.1
$region0: #{tpu_custom_call.1}
  #allocation0 [shape = 'u32[]', space=smem, size = 0x4, offset = 0x4, fixed_abs, tag = 'smem constant byte address 0x4 - core index']
  #allocation1 [shape = 'u32[72,128]{1,0:T(1,128)}', space=vmem, size = 0x9000, scoped, tag = 'internal scratch']
  %s0 = inlined_call_operand.vmem [shape: f32[64,32], index: 0, kind: input, shape index: {}]
  %s1 = inlined_call_operand.vmem [shape: f32[32,32], index: 1, kind: input, shape index: {}]
  %s2 = inlined_call_operand.vmem [shape: f32[32,2], index: 2, kind: input, shape index: {}]
  %s3 = inlined_call_operand.vmem [shape: f32[64,2], index: 3, kind: output, shape index: {}]
  %s4 = sld [smem:[#allocation0]]
  $region22: #{tpu_custom_call.1} parent=0
    _
  %s6 = ssub.s32 1, %s4
  %s7 = scalar_select 0, %s6, %s4
  // Predicated region
  $region2: #{tpu_custom_call.1} parent=0 // pred_check
    _
  $region3: #{tpu_custom_call.1} parent=0 // pred_check_branch
    %9 = sbr.rel (0) target = $region5
  $region4: #{tpu_custom_call.1} parent=0 // pred_region
    _
  $region5: #{tpu_custom_call.1} parent=0 // pred_fallthru
    _
  // Predicated region
  $region6: #{tpu_custom_call.1} parent=0 // pred_check
    _
  $region7: #{tpu_custom_call.1} parent=0 // pred_check_branch
    %11 = sbr.rel (0) target = $region9
  $region8: #{tpu_custom_call.1} parent=0 // pred_region
    _
  $region9: #{tpu_custom_call.1} parent=0 // pred_fallthru
    _
  // Predicated region
  $region10: #{tpu_custom_call.1} parent=0 // pred_check
    _
  $region11: #{tpu_custom_call.1} parent=0 // pred_check_branch
    %13 = sbr.rel (0) target = $region13
  $region12: #{tpu_custom_call.1} parent=0 // pred_region
    _
  $region13: #{tpu_custom_call.1} parent=0 // pred_fallthru
    _
  %v14 = vld [vmem:[%s0] sm:$0xff]
  %v15 = vld [vmem:[%s0 + $0x8] sm:$0xff]
  %v16 = vld [vmem:[%s0 + $0x10] sm:$0xff]
  %v17 = vld [vmem:[%s0 + $0x18] sm:$0xff]
  %v18 = vld [vmem:[%s0 + $0x20] sm:$0xff]
  %v19 = vld [vmem:[%s0 + $0x28] sm:$0xff]
  %v20 = vld [vmem:[%s0 + $0x30] sm:$0xff]
  %v21 = vld [vmem:[%s0 + $0x38] sm:$0xff]
  %v22 = vld [vmem:[%s1] sm:$0xff]
  %v23 = vld [vmem:[%s1 + $0x8] sm:$0xff]
  %v24 = vld [vmem:[%s1 + $0x10] sm:$0xff]
  %v25 = vld [vmem:[%s1 + $0x18] sm:$0xff]
  %v26 = vld [vmem:[%s2] sm:$0xff]
  %v27 = vld [vmem:[%s2 + $0x8] sm:$0xff]
  %v28 = vld [vmem:[%s2 + $0x10] sm:$0xff]
  %v29 = vld [vmem:[%s2 + $0x18] sm:$0xff]
  %vm30 = vcmask 261120
  %v32 = vsel %vm30, 0.0, 0
  %34 = vmatpush.msra.mxu0 0.0
  %35 = vmatpush.msra.mxu0 0.0
  %36 = vmatpush.msra.mxu0 0.0
  %37 = vmatpush.msra.mxu0 0.0
  %38 = vmatpush.msra.mxu0 0.0
  %39 = vmatpush.msra.mxu0 0.0
  %40 = vmatpush.msra.mxu0 0.0
  %41 = vmatpush.msra.mxu0 0.0
  %42 = vmatpush.msra.mxu0 0.0
  %43 = vmatpush.msra.mxu0 0.0
  %44 = vmatpush.msra.mxu0 0.0
  %45 = vmatpush.msra.mxu0 0.0
  %46 = vmatpush.msra.mxu0 %v25
  %47 = vmatpush.msra.mxu0 %v24
  %48 = vmatpush.msra.mxu0 %v23
  %49 = vmatpush.msra.mxu0 %v22
  %50 = vmatmul.f32.gmra.mxu0 %v32
  %v51 = vpop.f32.mrf.mxu0
  %v52 = vadd.f32 0.0, %v51
  %53 = vdwg.mxu0
  %v54 = vadd.f32 %v14, %v52
  %v55 = vtanh.pop %v54
  %v57 = vsel %vm30, %v55, 0
  %59 = vmatpush.msra.mxu0 0.0
  %60 = vmatpush.msra.mxu0 0.0
  %61 = vmatpush.msra.mxu0 0.0
  %62 = vmatpush.msra.mxu0 0.0
  %63 = vmatpush.msra.mxu0 0.0
  %64 = vmatpush.msra.mxu0 0.0
  %65 = vmatpush.msra.mxu0 0.0
  %66 = vmatpush.msra.mxu0 0.0
  %67 = vmatpush.msra.mxu0 0.0
  %68 = vmatpush.msra.mxu0 0.0
  %69 = vmatpush.msra.mxu0 0.0
  %70 = vmatpush.msra.mxu0 0.0
  %71 = vmatpush.msra.mxu0 %v29
  %72 = vmatpush.msra.mxu0 %v28
  %73 = vmatpush.msra.mxu0 %v27
  %74 = vmatpush.msra.mxu0 %v26
  %75 = vmatmul.f32.gmra.mxu0 %v57
  %v76 = vpop.f32.mrf.mxu0
  %v77 = vadd.f32 0.0, %v76
  %78 = vdwg.mxu0
  %vm79 = vcmask 15360
  %v80 = vsel %vm79, %v77, -inf
  %v81 = vrot.slane %v80, 4
  %v82 = vmax.f32 %v80, %v81
  %v83 = vrot.slane %v82, 2
  %v84 = vmax.f32 %v82, %v83
  %v85 = vrot.slane %v84, 1
  %v86 = vmax.f32 %v84, %v85
  %v87 = vsub.f32 %v77, %v86
  %v88 = vmul.f32 %v87, 1.442695
  %v89 = vpow.pop %v88
  %v90 = vsel %vm79, %v89, 0.0
  %v91 = vrot.slane %v90, 4
  %v92 = vadd.f32 %v90, %v91
  %v93 = vrot.slane %v92, 2
  %v94 = vadd.f32 %v92, %v93
  %v95 = vrot.slane %v94, 1
  %v96 = vadd.f32 %v94, %v95
  %v97 = vlog2.pop %v96
  %v98 = vmul.f32 %v97, 0.6931472
  %v99 = vsub.f32 %v87, %v98
  %100 = vmatpush.msra.mxu0 0.0
  %101 = vmatpush.msra.mxu0 0.0
  %102 = vmatpush.msra.mxu0 0.0
  %103 = vmatpush.msra.mxu0 0.0
  %104 = vmatpush.msra.mxu0 0.0
  %105 = vmatpush.msra.mxu0 0.0
  %106 = vmatpush.msra.mxu0 0.0
  %107 = vmatpush.msra.mxu0 0.0
  %108 = vmatpush.msra.mxu0 0.0
  %109 = vmatpush.msra.mxu0 0.0
  %110 = vmatpush.msra.mxu0 0.0
  %111 = vmatpush.msra.mxu0 0.0
  %112 = vmatpush.msra.mxu0 %v25
  %113 = vmatpush.msra.mxu0 %v24
  %114 = vmatpush.msra.mxu0 %v23
  %115 = vmatpush.msra.mxu0 %v22
  %116 = vmatmul.f32.gmra.mxu0 %v57
  %v117 = vpop.f32.mrf.mxu0
  %v118 = vadd.f32 0.0, %v117
  %119 = vdwg.mxu0
  %v120 = vadd.f32 %v15, %v118
  %v121 = vtanh.pop %v120
  %v123 = vsel %vm30, %v121, 0
  %125 = vmatpush.msra.mxu0 0.0
  %126 = vmatpush.msra.mxu0 0.0
  %127 = vmatpush.msra.mxu0 0.0
  %128 = vmatpush.msra.mxu0 0.0
  %129 = vmatpush.msra.mxu0 0.0
  %130 = vmatpush.msra.mxu0 0.0
  %131 = vmatpush.msra.mxu0 0.0
  %132 = vmatpush.msra.mxu0 0.0
  %133 = vmatpush.msra.mxu0 0.0
  %134 = vmatpush.msra.mxu0 0.0
  %135 = vmatpush.msra.mxu0 0.0
  %136 = vmatpush.msra.mxu0 0.0
  %137 = vmatpush.msra.mxu0 %v29
  %138 = vmatpush.msra.mxu0 %v28
  %139 = vmatpush.msra.mxu0 %v27
  %140 = vmatpush.msra.mxu0 %v26
  %141 = vmatmul.f32.gmra.mxu0 %v123
  %v142 = vpop.f32.mrf.mxu0
  %v143 = vadd.f32 0.0, %v142
  %144 = vdwg.mxu0
  %v145 = vsel %vm79, %v143, -inf
  %v146 = vrot.slane %v145, 4
  %v147 = vmax.f32 %v145, %v146
  %v148 = vrot.slane %v147, 2
  %v149 = vmax.f32 %v147, %v148
  %v150 = vrot.slane %v149, 1
  %v151 = vmax.f32 %v149, %v150
  %v152 = vsub.f32 %v143, %v151
  %v153 = vmul.f32 %v152, 1.442695
  %v154 = vpow.pop %v153
  %v155 = vsel %vm79, %v154, 0.0
  %v156 = vrot.slane %v155, 4
  %v157 = vadd.f32 %v155, %v156
  %v158 = vrot.slane %v157, 2
  %v159 = vadd.f32 %v157, %v158
  %v160 = vrot.slane %v159, 1
  %v161 = vadd.f32 %v159, %v160
  %v162 = vlog2.pop %v161
  %v163 = vmul.f32 %v162, 0.6931472
  %v164 = vsub.f32 %v152, %v163
  %165 = vmatpush.msra.mxu0 0.0
  %166 = vmatpush.msra.mxu0 0.0
  %167 = vmatpush.msra.mxu0 0.0
  %168 = vmatpush.msra.mxu0 0.0
  %169 = vmatpush.msra.mxu0 0.0
  %170 = vmatpush.msra.mxu0 0.0
  %171 = vmatpush.msra.mxu0 0.0
  %172 = vmatpush.msra.mxu0 0.0
  %173 = vmatpush.msra.mxu0 0.0
  %174 = vmatpush.msra.mxu0 0.0
  %175 = vmatpush.msra.mxu0 0.0
  %176 = vmatpush.msra.mxu0 0.0
  %177 = vmatpush.msra.mxu0 %v25
  %178 = vmatpush.msra.mxu0 %v24
  %179 = vmatpush.msra.mxu0 %v23
  %180 = vmatpush.msra.mxu0 %v22
  %181 = vmatmul.f32.gmra.mxu0 %v123
  %v182 = vpop.f32.mrf.mxu0
  %v183 = vadd.f32 0.0, %v182
  %184 = vdwg.mxu0
  %v185 = vadd.f32 %v16, %v183
  %v186 = vtanh.pop %v185
  %v188 = vsel %vm30, %v186, 0
  %190 = vmatpush.msra.mxu0 0.0
  %191 = vmatpush.msra.mxu0 0.0
  %192 = vmatpush.msra.mxu0 0.0
  %193 = vmatpush.msra.mxu0 0.0
  %194 = vmatpush.msra.mxu0 0.0
  %195 = vmatpush.msra.mxu0 0.0
  %196 = vmatpush.msra.mxu0 0.0
  %197 = vmatpush.msra.mxu0 0.0
  %198 = vmatpush.msra.mxu0 0.0
  %199 = vmatpush.msra.mxu0 0.0
  %200 = vmatpush.msra.mxu0 0.0
  %201 = vmatpush.msra.mxu0 0.0
  %202 = vmatpush.msra.mxu0 %v29
  %203 = vmatpush.msra.mxu0 %v28
  %204 = vmatpush.msra.mxu0 %v27
  %205 = vmatpush.msra.mxu0 %v26
  %206 = vmatmul.f32.gmra.mxu0 %v188
  %v207 = vpop.f32.mrf.mxu0
  %v208 = vadd.f32 0.0, %v207
  %209 = vdwg.mxu0
  %v210 = vsel %vm79, %v208, -inf
  %v211 = vrot.slane %v210, 4
  %v212 = vmax.f32 %v210, %v211
  %v213 = vrot.slane %v212, 2
  %v214 = vmax.f32 %v212, %v213
  %v215 = vrot.slane %v214, 1
  %v216 = vmax.f32 %v214, %v215
  %v217 = vsub.f32 %v208, %v216
  %v218 = vmul.f32 %v217, 1.442695
  %v219 = vpow.pop %v218
  %v220 = vsel %vm79, %v219, 0.0
  %v221 = vrot.slane %v220, 4
  %v222 = vadd.f32 %v220, %v221
  %v223 = vrot.slane %v222, 2
  %v224 = vadd.f32 %v222, %v223
  %v225 = vrot.slane %v224, 1
  %v226 = vadd.f32 %v224, %v225
  %v227 = vlog2.pop %v226
  %v228 = vmul.f32 %v227, 0.6931472
  %v229 = vsub.f32 %v217, %v228
  %230 = vmatpush.msra.mxu0 0.0
  %231 = vmatpush.msra.mxu0 0.0
  %232 = vmatpush.msra.mxu0 0.0
  %233 = vmatpush.msra.mxu0 0.0
  %234 = vmatpush.msra.mxu0 0.0
  %235 = vmatpush.msra.mxu0 0.0
  %236 = vmatpush.msra.mxu0 0.0
  %237 = vmatpush.msra.mxu0 0.0
  %238 = vmatpush.msra.mxu0 0.0
  %239 = vmatpush.msra.mxu0 0.0
  %240 = vmatpush.msra.mxu0 0.0
  %241 = vmatpush.msra.mxu0 0.0
  %242 = vmatpush.msra.mxu0 %v25
  %243 = vmatpush.msra.mxu0 %v24
  %244 = vmatpush.msra.mxu0 %v23
  %245 = vmatpush.msra.mxu0 %v22
  %246 = vmatmul.f32.gmra.mxu0 %v188
  %v247 = vpop.f32.mrf.mxu0
  %v248 = vadd.f32 0.0, %v247
  %249 = vdwg.mxu0
  %v250 = vadd.f32 %v17, %v248
  %v251 = vtanh.pop %v250
  %v253 = vsel %vm30, %v251, 0
  %255 = vmatpush.msra.mxu0 0.0
  %256 = vmatpush.msra.mxu0 0.0
  %257 = vmatpush.msra.mxu0 0.0
  %258 = vmatpush.msra.mxu0 0.0
  %259 = vmatpush.msra.mxu0 0.0
  %260 = vmatpush.msra.mxu0 0.0
  %261 = vmatpush.msra.mxu0 0.0
  %262 = vmatpush.msra.mxu0 0.0
  %263 = vmatpush.msra.mxu0 0.0
  %264 = vmatpush.msra.mxu0 0.0
  %265 = vmatpush.msra.mxu0 0.0
  %266 = vmatpush.msra.mxu0 0.0
  %267 = vmatpush.msra.mxu0 %v29
  %268 = vmatpush.msra.mxu0 %v28
  %269 = vmatpush.msra.mxu0 %v27
  %270 = vmatpush.msra.mxu0 %v26
  %271 = vmatmul.f32.gmra.mxu0 %v253
  %v272 = vpop.f32.mrf.mxu0
  %v273 = vadd.f32 0.0, %v272
  %274 = vdwg.mxu0
  %v275 = vsel %vm79, %v273, -inf
  %v276 = vrot.slane %v275, 4
  %v277 = vmax.f32 %v275, %v276
  %v278 = vrot.slane %v277, 2
  %v279 = vmax.f32 %v277, %v278
  %v280 = vrot.slane %v279, 1
  %v281 = vmax.f32 %v279, %v280
  %v282 = vsub.f32 %v273, %v281
  %v283 = vmul.f32 %v282, 1.442695
  %v284 = vpow.pop %v283
  %v285 = vsel %vm79, %v284, 0.0
  %v286 = vrot.slane %v285, 4
  %v287 = vadd.f32 %v285, %v286
  %v288 = vrot.slane %v287, 2
  %v289 = vadd.f32 %v287, %v288
  %v290 = vrot.slane %v289, 1
  %v291 = vadd.f32 %v289, %v290
  %v292 = vlog2.pop %v291
  %v293 = vmul.f32 %v292, 0.6931472
  %v294 = vsub.f32 %v282, %v293
  %295 = vmatpush.msra.mxu0 0.0
  %296 = vmatpush.msra.mxu0 0.0
  %297 = vmatpush.msra.mxu0 0.0
  %298 = vmatpush.msra.mxu0 0.0
  %299 = vmatpush.msra.mxu0 0.0
  %300 = vmatpush.msra.mxu0 0.0
  %301 = vmatpush.msra.mxu0 0.0
  %302 = vmatpush.msra.mxu0 0.0
  %303 = vmatpush.msra.mxu0 0.0
  %304 = vmatpush.msra.mxu0 0.0
  %305 = vmatpush.msra.mxu0 0.0
  %306 = vmatpush.msra.mxu0 0.0
  %307 = vmatpush.msra.mxu0 %v25
  %308 = vmatpush.msra.mxu0 %v24
  %309 = vmatpush.msra.mxu0 %v23
  %310 = vmatpush.msra.mxu0 %v22
  %311 = vmatmul.f32.gmra.mxu0 %v253
  %v312 = vpop.f32.mrf.mxu0
  %v313 = vadd.f32 0.0, %v312
  %314 = vdwg.mxu0
  %v315 = vadd.f32 %v18, %v313
  %v316 = vtanh.pop %v315
  %v318 = vsel %vm30, %v316, 0
  %320 = vmatpush.msra.mxu0 0.0
  %321 = vmatpush.msra.mxu0 0.0
  %322 = vmatpush.msra.mxu0 0.0
  %323 = vmatpush.msra.mxu0 0.0
  %324 = vmatpush.msra.mxu0 0.0
  %325 = vmatpush.msra.mxu0 0.0
  %326 = vmatpush.msra.mxu0 0.0
  %327 = vmatpush.msra.mxu0 0.0
  %328 = vmatpush.msra.mxu0 0.0
  %329 = vmatpush.msra.mxu0 0.0
  %330 = vmatpush.msra.mxu0 0.0
  %331 = vmatpush.msra.mxu0 0.0
  %332 = vmatpush.msra.mxu0 %v29
  %333 = vmatpush.msra.mxu0 %v28
  %334 = vmatpush.msra.mxu0 %v27
  %335 = vmatpush.msra.mxu0 %v26
  %336 = vmatmul.f32.gmra.mxu0 %v318
  %v337 = vpop.f32.mrf.mxu0
  %v338 = vadd.f32 0.0, %v337
  %339 = vdwg.mxu0
  %v340 = vsel %vm79, %v338, -inf
  %v341 = vrot.slane %v340, 4
  %v342 = vmax.f32 %v340, %v341
  %v343 = vrot.slane %v342, 2
  %v344 = vmax.f32 %v342, %v343
  %v345 = vrot.slane %v344, 1
  %v346 = vmax.f32 %v344, %v345
  %v347 = vsub.f32 %v338, %v346
  %v348 = vmul.f32 %v347, 1.442695
  %v349 = vpow.pop %v348
  %v350 = vsel %vm79, %v349, 0.0
  %v351 = vrot.slane %v350, 4
  %v352 = vadd.f32 %v350, %v351
  %v353 = vrot.slane %v352, 2
  %v354 = vadd.f32 %v352, %v353
  %v355 = vrot.slane %v354, 1
  %v356 = vadd.f32 %v354, %v355
  %v357 = vlog2.pop %v356
  %v358 = vmul.f32 %v357, 0.6931472
  %v359 = vsub.f32 %v347, %v358
  %360 = vmatpush.msra.mxu0 0.0
  %361 = vmatpush.msra.mxu0 0.0
  %362 = vmatpush.msra.mxu0 0.0
  %363 = vmatpush.msra.mxu0 0.0
  %364 = vmatpush.msra.mxu0 0.0
  %365 = vmatpush.msra.mxu0 0.0
  %366 = vmatpush.msra.mxu0 0.0
  %367 = vmatpush.msra.mxu0 0.0
  %368 = vmatpush.msra.mxu0 0.0
  %369 = vmatpush.msra.mxu0 0.0
  %370 = vmatpush.msra.mxu0 0.0
  %371 = vmatpush.msra.mxu0 0.0
  %372 = vmatpush.msra.mxu0 %v25
  %373 = vmatpush.msra.mxu0 %v24
  %374 = vmatpush.msra.mxu0 %v23
  %375 = vmatpush.msra.mxu0 %v22
  %376 = vmatmul.f32.gmra.mxu0 %v318
  %v377 = vpop.f32.mrf.mxu0
  %v378 = vadd.f32 0.0, %v377
  %379 = vdwg.mxu0
  %v380 = vadd.f32 %v19, %v378
  %v381 = vtanh.pop %v380
  %v383 = vsel %vm30, %v381, 0
  %385 = vmatpush.msra.mxu0 0.0
  %386 = vmatpush.msra.mxu0 0.0
  %387 = vmatpush.msra.mxu0 0.0
  %388 = vmatpush.msra.mxu0 0.0
  %389 = vmatpush.msra.mxu0 0.0
  %390 = vmatpush.msra.mxu0 0.0
  %391 = vmatpush.msra.mxu0 0.0
  %392 = vmatpush.msra.mxu0 0.0
  %393 = vmatpush.msra.mxu0 0.0
  %394 = vmatpush.msra.mxu0 0.0
  %395 = vmatpush.msra.mxu0 0.0
  %396 = vmatpush.msra.mxu0 0.0
  %397 = vmatpush.msra.mxu0 %v29
  %398 = vmatpush.msra.mxu0 %v28
  %399 = vmatpush.msra.mxu0 %v27
  %400 = vmatpush.msra.mxu0 %v26
  %401 = vmatmul.f32.gmra.mxu0 %v383
  %v402 = vpop.f32.mrf.mxu0
  %v403 = vadd.f32 0.0, %v402
  %404 = vdwg.mxu0
  %v405 = vsel %vm79, %v403, -inf
  %v406 = vrot.slane %v405, 4
  %v407 = vmax.f32 %v405, %v406
  %v408 = vrot.slane %v407, 2
  %v409 = vmax.f32 %v407, %v408
  %v410 = vrot.slane %v409, 1
  %v411 = vmax.f32 %v409, %v410
  %v412 = vsub.f32 %v403, %v411
  %v413 = vmul.f32 %v412, 1.442695
  %v414 = vpow.pop %v413
  %v415 = vsel %vm79, %v414, 0.0
  %v416 = vrot.slane %v415, 4
  %v417 = vadd.f32 %v415, %v416
  %v418 = vrot.slane %v417, 2
  %v419 = vadd.f32 %v417, %v418
  %v420 = vrot.slane %v419, 1
  %v421 = vadd.f32 %v419, %v420
  %v422 = vlog2.pop %v421
  %v423 = vmul.f32 %v422, 0.6931472
  %v424 = vsub.f32 %v412, %v423
  %425 = vmatpush.msra.mxu0 0.0
  %426 = vmatpush.msra.mxu0 0.0
  %427 = vmatpush.msra.mxu0 0.0
  %428 = vmatpush.msra.mxu0 0.0
  %429 = vmatpush.msra.mxu0 0.0
  %430 = vmatpush.msra.mxu0 0.0
  %431 = vmatpush.msra.mxu0 0.0
  %432 = vmatpush.msra.mxu0 0.0
  %433 = vmatpush.msra.mxu0 0.0
  %434 = vmatpush.msra.mxu0 0.0
  %435 = vmatpush.msra.mxu0 0.0
  %436 = vmatpush.msra.mxu0 0.0
  %437 = vmatpush.msra.mxu0 %v25
  %438 = vmatpush.msra.mxu0 %v24
  %439 = vmatpush.msra.mxu0 %v23
  %440 = vmatpush.msra.mxu0 %v22
  %441 = vmatmul.f32.gmra.mxu0 %v383
  %v442 = vpop.f32.mrf.mxu0
  %v443 = vadd.f32 0.0, %v442
  %444 = vdwg.mxu0
  %v445 = vadd.f32 %v20, %v443
  %v446 = vtanh.pop %v445
  %v448 = vsel %vm30, %v446, 0
  %450 = vmatpush.msra.mxu0 0.0
  %451 = vmatpush.msra.mxu0 0.0
  %452 = vmatpush.msra.mxu0 0.0
  %453 = vmatpush.msra.mxu0 0.0
  %454 = vmatpush.msra.mxu0 0.0
  %455 = vmatpush.msra.mxu0 0.0
  %456 = vmatpush.msra.mxu0 0.0
  %457 = vmatpush.msra.mxu0 0.0
  %458 = vmatpush.msra.mxu0 0.0
  %459 = vmatpush.msra.mxu0 0.0
  %460 = vmatpush.msra.mxu0 0.0
  %461 = vmatpush.msra.mxu0 0.0
  %462 = vmatpush.msra.mxu0 %v29
  %463 = vmatpush.msra.mxu0 %v28
  %464 = vmatpush.msra.mxu0 %v27
  %465 = vmatpush.msra.mxu0 %v26
  %466 = vmatmul.f32.gmra.mxu0 %v448
  %v467 = vpop.f32.mrf.mxu0
  %v468 = vadd.f32 0.0, %v467
  %469 = vdwg.mxu0
  %v470 = vsel %vm79, %v468, -inf
  %v471 = vrot.slane %v470, 4
  %v472 = vmax.f32 %v470, %v471
  %v473 = vrot.slane %v472, 2
  %v474 = vmax.f32 %v472, %v473
  %v475 = vrot.slane %v474, 1
  %v476 = vmax.f32 %v474, %v475
  %v477 = vsub.f32 %v468, %v476
  %v478 = vmul.f32 %v477, 1.442695
  %v479 = vpow.pop %v478
  %v480 = vsel %vm79, %v479, 0.0
  %v481 = vrot.slane %v480, 4
  %v482 = vadd.f32 %v480, %v481
  %v483 = vrot.slane %v482, 2
  %v484 = vadd.f32 %v482, %v483
  %v485 = vrot.slane %v484, 1
  %v486 = vadd.f32 %v484, %v485
  %v487 = vlog2.pop %v486
  %v488 = vmul.f32 %v487, 0.6931472
  %v489 = vsub.f32 %v477, %v488
  %490 = vmatpush.msra.mxu0 0.0
  %491 = vmatpush.msra.mxu0 0.0
  %492 = vmatpush.msra.mxu0 0.0
  %493 = vmatpush.msra.mxu0 0.0
  %494 = vmatpush.msra.mxu0 0.0
  %495 = vmatpush.msra.mxu0 0.0
  %496 = vmatpush.msra.mxu0 0.0
  %497 = vmatpush.msra.mxu0 0.0
  %498 = vmatpush.msra.mxu0 0.0
  %499 = vmatpush.msra.mxu0 0.0
  %500 = vmatpush.msra.mxu0 0.0
  %501 = vmatpush.msra.mxu0 0.0
  %502 = vmatpush.msra.mxu0 %v25
  %503 = vmatpush.msra.mxu0 %v24
  %504 = vmatpush.msra.mxu0 %v23
  %505 = vmatpush.msra.mxu0 %v22
  %506 = vmatmul.f32.gmra.mxu0 %v448
  %v507 = vpop.f32.mrf.mxu0
  %v508 = vadd.f32 0.0, %v507
  %509 = vdwg.mxu0
  %v510 = vadd.f32 %v21, %v508
  %v511 = vtanh.pop %v510
  %v513 = vsel %vm30, %v511, 0
  %515 = vmatpush.msra.mxu0 0.0
  %516 = vmatpush.msra.mxu0 0.0
  %517 = vmatpush.msra.mxu0 0.0
  %518 = vmatpush.msra.mxu0 0.0
  %519 = vmatpush.msra.mxu0 0.0
  %520 = vmatpush.msra.mxu0 0.0
  %521 = vmatpush.msra.mxu0 0.0
  %522 = vmatpush.msra.mxu0 0.0
  %523 = vmatpush.msra.mxu0 0.0
  %524 = vmatpush.msra.mxu0 0.0
  %525 = vmatpush.msra.mxu0 0.0
  %526 = vmatpush.msra.mxu0 0.0
  %527 = vmatpush.msra.mxu0 %v29
  %528 = vmatpush.msra.mxu0 %v28
  %529 = vmatpush.msra.mxu0 %v27
  %530 = vmatpush.msra.mxu0 %v26
  %531 = vmatmul.f32.gmra.mxu0 %v513
  %v532 = vpop.f32.mrf.mxu0
  %v533 = vadd.f32 0.0, %v532
  %534 = vdwg.mxu0
  %v535 = vsel %vm79, %v533, -inf
  %v536 = vrot.slane %v535, 4
  %v537 = vmax.f32 %v535, %v536
  %v538 = vrot.slane %v537, 2
  %v539 = vmax.f32 %v537, %v538
  %v540 = vrot.slane %v539, 1
  %v541 = vmax.f32 %v539, %v540
  %v542 = vsub.f32 %v533, %v541
  %v543 = vmul.f32 %v542, 1.442695
  %v544 = vpow.pop %v543
  %v545 = vsel %vm79, %v544, 0.0
  %v546 = vrot.slane %v545, 4
  %v547 = vadd.f32 %v545, %v546
  %v548 = vrot.slane %v547, 2
  %v549 = vadd.f32 %v547, %v548
  %v550 = vrot.slane %v549, 1
  %v551 = vadd.f32 %v549, %v550
  %v552 = vlog2.pop %v551
  %v553 = vmul.f32 %v552, 0.6931472
  %v554 = vsub.f32 %v542, %v553
  %555 = vst.msk [vmem:[%s3] sm:$0xff] %vm79, %v99
  %556 = vst.msk [vmem:[%s3 + $0x8] sm:$0xff] %vm79, %v164
  %557 = vst.msk [vmem:[%s3 + $0x10] sm:$0xff] %vm79, %v229
  %558 = vst.msk [vmem:[%s3 + $0x18] sm:$0xff] %vm79, %v294
  %559 = vst.msk [vmem:[%s3 + $0x20] sm:$0xff] %vm79, %v359
  %560 = vst.msk [vmem:[%s3 + $0x28] sm:$0xff] %vm79, %v424
  %561 = vst.msk [vmem:[%s3 + $0x30] sm:$0xff] %vm79, %v489
  %562 = vst.msk [vmem:[%s3 + $0x38] sm:$0xff] %vm79, %v554
  // Predicated region
  $region14: #{tpu_custom_call.1} parent=0 // pred_check
    _
  $region15: #{tpu_custom_call.1} parent=0 // pred_check_branch
    %564 = sbr.rel (0) target = $region17
  $region16: #{tpu_custom_call.1} parent=0 // pred_region
    _
  $region17: #{tpu_custom_call.1} parent=0 // pred_fallthru
    _
  // Predicated region
  $region18: #{tpu_custom_call.1} parent=0 // pred_check
    _
  $region19: #{tpu_custom_call.1} parent=0 // pred_check_branch
    %566 = sbr.rel (0) target = $region21
  $region20: #{tpu_custom_call.1} parent=0 // pred_region
    _
  $region21: #{tpu_custom_call.1} parent=0 // pred_fallthru
    _

</llo_original>
